<compile_context>
chip_gen: v6e
topology: v6e:2x2x1
jax: 0.10.0
libtpu: 0.0.40
codegen_flags: <defaults>
</compile_context>

<pallas_src>
import jax
import jax.numpy as jnp
from jax.experimental import pallas as pl
from jax.experimental.pallas import tpu as pltpu

IN_F = 49
H1, H2, H3, OUT_F = 400, 200, 50, 4
OUT_P = 128  # lane-dense padded output width


def _mlp_kernel(x_ref, w1_ref, b1_ref, w2_ref, b2_ref, w3_ref, b3_ref,
                w4_ref, b4_ref, o_ref):
    # One batch tile per grid step; all weights/biases are VMEM-resident
    # across the whole grid (constant index_map).
    x = x_ref[...].astype(jnp.bfloat16)                               # in-kernel cast (TB, 49)

    h = jnp.dot(x, w1_ref[...], preferred_element_type=jnp.float32) + b1_ref[...]
    h = jnp.maximum(h, 0.0).astype(jnp.bfloat16)                      # (TB, 400)

    h = jnp.dot(h, w2_ref[...], preferred_element_type=jnp.float32) + b2_ref[...]
    h = jnp.maximum(h, 0.0).astype(jnp.bfloat16)                      # (TB, 200)

    h = jnp.dot(h, w3_ref[...], preferred_element_type=jnp.float32) + b3_ref[...]
    h = jnp.maximum(h, 0.0).astype(jnp.bfloat16)                      # (TB, 50)

    logits = jnp.dot(h, w4_ref[...], preferred_element_type=jnp.float32) + b4_ref[...]
    o_ref[...] = jax.nn.sigmoid(logits).astype(o_ref.dtype)           # (TB, 128) f32, lane-dense


def _round_up(v, m):
    return (v + m - 1) // m * m


def net_forward(x, params, tile_b=2048):
    """x: (B, 1, 7, 7) or (B, 7, 7) float. Returns (B, 4) float32."""
    B = x.shape[0]
    x2d = x.reshape(B, -1).astype(jnp.float32)
    assert x2d.shape[1] == IN_F, f"expected {IN_F} features, got {x2d.shape[1]}"

    # Tile-size policy:
    #   - small batches: one tile, rounded to 16 rows (sublane alignment).
    #   - larger batches: big tiles (default 2048, multiple of 256) but never
    #     fewer than 2 grid steps so both v7x TensorCores get work.
    if B < 512:
        tile_b = _round_up(B, 16)
    else:
        tile_b = min(_round_up(tile_b, 256), _round_up(pl.cdiv(B, 2), 256))
    Bp = _round_up(B, tile_b)
    if Bp != B:
        x2d = jnp.pad(x2d, ((0, Bp - B), (0, 0)))

    (w1, b1), (w2, b2), (w3, b3), (w4, b4) = params
    # bf16 weights: half the HBM->VMEM traffic, native MXU bf16 path.
    w1, w2, w3 = (w.astype(jnp.bfloat16) for w in (w1, w2, w3))
    b1, b2, b3 = (b.astype(jnp.float32) for b in (b1, b2, b3))
    # Pad the last layer to 128 output columns -> lane-dense, unmasked stores.
    w4p = jnp.zeros((H3, OUT_P), jnp.bfloat16).at[:, :OUT_F].set(w4.astype(jnp.bfloat16))
    b4p = jnp.zeros((1, OUT_P), jnp.float32).at[:, :OUT_F].set(b4.astype(jnp.float32).reshape(1, OUT_F))

    grid = (Bp // tile_b,)

    def const_spec(a):
        nd = a.ndim
        return pl.BlockSpec(a.shape, lambda i, _nd=nd: (0,) * _nd)

    layer_macs = IN_F * H1 + H1 * H2 + H2 * H3 + H3 * OUT_P
    weight_bytes = 2 * layer_macs + 4 * (H1 + H2 + H3 + OUT_P)
    cost = pl.CostEstimate(
        flops=2 * Bp * layer_macs,
        transcendentals=2 * Bp * OUT_P,                       # sigmoid ~ exp + reciprocal
        bytes_accessed=Bp * IN_F * 4 + weight_bytes + Bp * OUT_P * 4,
    )

    out = pl.pallas_call(
        _mlp_kernel,
        out_shape=jax.ShapeDtypeStruct((Bp, OUT_P), jnp.float32),
        grid=grid,
        in_specs=[
            pl.BlockSpec((tile_b, IN_F), lambda i: (i, 0)),   # f32 batch tile of x
            const_spec(w1), const_spec(b1),
            const_spec(w2), const_spec(b2),
            const_spec(w3), const_spec(b3),
            const_spec(w4p), const_spec(b4p),
        ],
        out_specs=pl.BlockSpec((tile_b, OUT_P), lambda i: (i, 0)),
        compiler_params=pltpu.CompilerParams(
            dimension_semantics=("parallel",),                # 2 TCs on v7x; no-op on v5e/v6e
            vmem_limit_bytes=48 * 1024 * 1024,                # big tiles OK on v5e/v6e/v7x
        ),
        cost_estimate=cost,
    )(x2d, w1, b1, w2, b2, w3, b3, w4p, b4p)

    return out[:B, :OUT_F]


def net_forward_ref(x, params):
    """Pure-JAX f32 reference (matches the PyTorch forward)."""
    h = x.reshape(x.shape[0], -1).astype(jnp.float32)
    for i, (w, b) in enumerate(params):
        h = h @ w + b
        if i < len(params) - 1:
            h = jnp.maximum(h, 0.0)
    return jax.nn.sigmoid(h)


def init_params(key):
    """Deterministic init matching PyTorch Linear default U(-1/sqrt(fan_in), +).

    NOTE: weights are stored (in_features, out_features); transposed relative
    to a real PyTorch nn.Linear state_dict.
    """
    sizes = [(IN_F, H1), (H1, H2), (H2, H3), (H3, OUT_F)]
    params = []
    for fan_in, fan_out in sizes:
        key, kw, kb = jax.random.split(key, 3)
        bound = 1.0 / jnp.sqrt(fan_in)
        w = jax.random.uniform(kw, (fan_in, fan_out), jnp.float32, -bound, bound)
        b = jax.random.uniform(kb, (1, fan_out), jnp.float32, -bound, bound)
        params.append((w, b))
    return params


if __name__ == "__main__":
    key = jax.random.PRNGKey(0)
    kx, kp = jax.random.split(key)

    # Small batch of 7x7 single-channel inputs (49 features after flatten).
    x = jax.random.normal(kx, (8, 1, 7, 7), dtype=jnp.float32)
    params = init_params(kp)

    y = net_forward(x, params)
    y = jax.block_until_ready(y)

    assert y.shape == (8, 4)
    assert bool(jnp.all((y > 0.0) & (y < 1.0)))

    # Tolerance check against the f32 reference (bf16 weights => ~1e-2 rel dev).
    y_ref = net_forward_ref(x, params)
    assert bool(jnp.max(jnp.abs(y - y_ref)) < 2e-2), "mismatch vs f32 reference"

    print("KERNEL_OK")
</pallas_src>

<mosaic_0001>
module attributes {stable_mosaic.version = 11 : i64} {
  func.func @_mlp_kernel(%arg0: i32, %arg1: memref<16x49xf32, #tpu.memory_space<vmem>>, %arg2: memref<49x400xbf16, #tpu.memory_space<vmem>>, %arg3: memref<1x400xf32, #tpu.memory_space<vmem>>, %arg4: memref<400x200xbf16, #tpu.memory_space<vmem>>, %arg5: memref<1x200xf32, #tpu.memory_space<vmem>>, %arg6: memref<200x50xbf16, #tpu.memory_space<vmem>>, %arg7: memref<1x50xf32, #tpu.memory_space<vmem>>, %arg8: memref<50x128xbf16, #tpu.memory_space<vmem>>, %arg9: memref<1x128xf32, #tpu.memory_space<vmem>>, %arg10: memref<16x128xf32, #tpu.memory_space<vmem>>) attributes {dimension_semantics = [#tpu.dimension_semantics<parallel>], iteration_bounds = array<i64: 1>, scalar_prefetch = 0 : i64, scratch_operands = 0 : i64, tpu.core_type = #tpu.core_type<tc>, window_params = [{transform_indices = @transform_0, window_bounds = array<i64: 16, 49>}, {pipeline_mode = #tpu.pipeline_mode<synchronous>, transform_indices = @transform_1, window_bounds = array<i64: 49, 400>}, {pipeline_mode = #tpu.pipeline_mode<synchronous>, transform_indices = @transform_2, window_bounds = array<i64: 1, 400>}, {pipeline_mode = #tpu.pipeline_mode<synchronous>, transform_indices = @transform_3, window_bounds = array<i64: 400, 200>}, {pipeline_mode = #tpu.pipeline_mode<synchronous>, transform_indices = @transform_4, window_bounds = array<i64: 1, 200>}, {pipeline_mode = #tpu.pipeline_mode<synchronous>, transform_indices = @transform_5, window_bounds = array<i64: 200, 50>}, {pipeline_mode = #tpu.pipeline_mode<synchronous>, transform_indices = @transform_6, window_bounds = array<i64: 1, 50>}, {pipeline_mode = #tpu.pipeline_mode<synchronous>, transform_indices = @transform_7, window_bounds = array<i64: 50, 128>}, {pipeline_mode = #tpu.pipeline_mode<synchronous>, transform_indices = @transform_8, window_bounds = array<i64: 1, 128>}, {transform_indices = @transform_9, window_bounds = array<i64: 16, 128>}]} {
    %c0 = arith.constant 0 : index
    %c0_0 = arith.constant 0 : index
    %0 = vector.load %arg1[%c0, %c0_0] : memref<16x49xf32, #tpu.memory_space<vmem>>, vector<16x49xf32>
    %1 = arith.truncf %0 : vector<16x49xf32> to vector<16x49xbf16>
    %c0_1 = arith.constant 0 : index
    %c0_2 = arith.constant 0 : index
    %2 = vector.load %arg2[%c0_1, %c0_2] : memref<49x400xbf16, #tpu.memory_space<vmem>>, vector<49x400xbf16>
    %cst = arith.constant dense<0.000000e+00> : vector<16x400xf32>
    %3 = tpu.matmul %1, %2, %cst {dimension_numbers = #tpu.dot_dimension_numbers<[1], [0], [0], [1], [0, 0, 1, 1], [], []>} : vector<16x49xbf16>, vector<49x400xbf16>, vector<16x400xf32> -> vector<16x400xf32>
    %c0_3 = arith.constant 0 : index
    %c0_4 = arith.constant 0 : index
    %4 = vector.load %arg3[%c0_3, %c0_4] : memref<1x400xf32, #tpu.memory_space<vmem>>, vector<1x400xf32>
    %5 = vector.broadcast %4 : vector<1x400xf32> to vector<16x400xf32>
    %6 = arith.addf %3, %5 : vector<16x400xf32>
    %cst_5 = arith.constant 0.000000e+00 : f32
    %7 = vector.broadcast %cst_5 : f32 to vector<16x400xf32>
    %8 = arith.maximumf %6, %7 : vector<16x400xf32>
    %9 = arith.truncf %8 : vector<16x400xf32> to vector<16x400xbf16>
    %c0_6 = arith.constant 0 : index
    %c0_7 = arith.constant 0 : index
    %10 = vector.load %arg4[%c0_6, %c0_7] : memref<400x200xbf16, #tpu.memory_space<vmem>>, vector<400x200xbf16>
    %cst_8 = arith.constant dense<0.000000e+00> : vector<16x200xf32>
    %11 = tpu.matmul %9, %10, %cst_8 {dimension_numbers = #tpu.dot_dimension_numbers<[1], [0], [0], [1], [0, 0, 1, 1], [], []>} : vector<16x400xbf16>, vector<400x200xbf16>, vector<16x200xf32> -> vector<16x200xf32>
    %c0_9 = arith.constant 0 : index
    %c0_10 = arith.constant 0 : index
    %12 = vector.load %arg5[%c0_9, %c0_10] : memref<1x200xf32, #tpu.memory_space<vmem>>, vector<1x200xf32>
    %13 = vector.broadcast %12 : vector<1x200xf32> to vector<16x200xf32>
    %14 = arith.addf %11, %13 : vector<16x200xf32>
    %cst_11 = arith.constant 0.000000e+00 : f32
    %15 = vector.broadcast %cst_11 : f32 to vector<16x200xf32>
    %16 = arith.maximumf %14, %15 : vector<16x200xf32>
    %17 = arith.truncf %16 : vector<16x200xf32> to vector<16x200xbf16>
    %c0_12 = arith.constant 0 : index
    %c0_13 = arith.constant 0 : index
    %18 = vector.load %arg6[%c0_12, %c0_13] : memref<200x50xbf16, #tpu.memory_space<vmem>>, vector<200x50xbf16>
    %cst_14 = arith.constant dense<0.000000e+00> : vector<16x50xf32>
    %19 = tpu.matmul %17, %18, %cst_14 {dimension_numbers = #tpu.dot_dimension_numbers<[1], [0], [0], [1], [0, 0, 1, 1], [], []>} : vector<16x200xbf16>, vector<200x50xbf16>, vector<16x50xf32> -> vector<16x50xf32>
    %c0_15 = arith.constant 0 : index
    %c0_16 = arith.constant 0 : index
    %20 = vector.load %arg7[%c0_15, %c0_16] : memref<1x50xf32, #tpu.memory_space<vmem>>, vector<1x50xf32>
    %21 = vector.broadcast %20 : vector<1x50xf32> to vector<16x50xf32>
    %22 = arith.addf %19, %21 : vector<16x50xf32>
    %cst_17 = arith.constant 0.000000e+00 : f32
    %23 = vector.broadcast %cst_17 : f32 to vector<16x50xf32>
    %24 = arith.maximumf %22, %23 : vector<16x50xf32>
    %25 = arith.truncf %24 : vector<16x50xf32> to vector<16x50xbf16>
    %c0_18 = arith.constant 0 : index
    %c0_19 = arith.constant 0 : index
    %26 = vector.load %arg8[%c0_18, %c0_19] : memref<50x128xbf16, #tpu.memory_space<vmem>>, vector<50x128xbf16>
    %cst_20 = arith.constant dense<0.000000e+00> : vector<16x128xf32>
    %27 = tpu.matmul %25, %26, %cst_20 {dimension_numbers = #tpu.dot_dimension_numbers<[1], [0], [0], [1], [0, 0, 1, 1], [], []>} : vector<16x50xbf16>, vector<50x128xbf16>, vector<16x128xf32> -> vector<16x128xf32>
    %c0_21 = arith.constant 0 : index
    %c0_22 = arith.constant 0 : index
    %28 = vector.load %arg9[%c0_21, %c0_22] : memref<1x128xf32, #tpu.memory_space<vmem>>, vector<1x128xf32>
    %29 = vector.broadcast %28 : vector<1x128xf32> to vector<16x128xf32>
    %30 = arith.addf %27, %29 : vector<16x128xf32>
    %31 = arith.negf %30 : vector<16x128xf32>
    %32 = math.exp %31 : vector<16x128xf32>
    %cst_23 = arith.constant 1.000000e+00 : f32
    %33 = vector.broadcast %cst_23 : f32 to vector<16x128xf32>
    %34 = arith.addf %33, %32 : vector<16x128xf32>
    %35 = arith.divf %33, %34 : vector<16x128xf32>
    %c0_24 = arith.constant 0 : index
    %c0_25 = arith.constant 0 : index
    %36 = vector.load %arg10[%c0_24, %c0_25] : memref<16x128xf32, #tpu.memory_space<vmem>>, vector<16x128xf32>
    tpu.vector_store %arg10[%c0_24, %c0_25], %35 {strides = array<i32>} : memref<16x128xf32, #tpu.memory_space<vmem>>, vector<16x128xf32>,
    return
  }
  func.func @transform_0(%arg0: i32) -> (i32, i32) {
    %c0_i32 = arith.constant 0 : i32
    %c0_i32_0 = arith.constant 0 : i32
    return %arg0, %c0_i32 : i32, i32
  }
  func.func @transform_1(%arg0: i32) -> (i32, i32) {
    %c0_i32 = arith.constant 0 : i32
    %c0_i32_0 = arith.constant 0 : i32
    %c0_i32_1 = arith.constant 0 : i32
    return %c0_i32, %c0_i32_0 : i32, i32
  }
  func.func @transform_2(%arg0: i32) -> (i32, i32) {
    %c0_i32 = arith.constant 0 : i32
    %c0_i32_0 = arith.constant 0 : i32
    %c0_i32_1 = arith.constant 0 : i32
    return %c0_i32, %c0_i32_0 : i32, i32
  }
  func.func @transform_3(%arg0: i32) -> (i32, i32) {
    %c0_i32 = arith.constant 0 : i32
    %c0_i32_0 = arith.constant 0 : i32
    %c0_i32_1 = arith.constant 0 : i32
    return %c0_i32, %c0_i32_0 : i32, i32
  }
  func.func @transform_4(%arg0: i32) -> (i32, i32) {
    %c0_i32 = arith.constant 0 : i32
    %c0_i32_0 = arith.constant 0 : i32
    %c0_i32_1 = arith.constant 0 : i32
    return %c0_i32, %c0_i32_0 : i32, i32
  }
  func.func @transform_5(%arg0: i32) -> (i32, i32) {
    %c0_i32 = arith.constant 0 : i32
    %c0_i32_0 = arith.constant 0 : i32
    %c0_i32_1 = arith.constant 0 : i32
    return %c0_i32, %c0_i32_0 : i32, i32
  }
  func.func @transform_6(%arg0: i32) -> (i32, i32) {
    %c0_i32 = arith.constant 0 : i32
    %c0_i32_0 = arith.constant 0 : i32
    %c0_i32_1 = arith.constant 0 : i32
    return %c0_i32, %c0_i32_0 : i32, i32
  }
  func.func @transform_7(%arg0: i32) -> (i32, i32) {
    %c0_i32 = arith.constant 0 : i32
    %c0_i32_0 = arith.constant 0 : i32
    %c0_i32_1 = arith.constant 0 : i32
    return %c0_i32, %c0_i32_0 : i32, i32
  }
  func.func @transform_8(%arg0: i32) -> (i32, i32) {
    %c0_i32 = arith.constant 0 : i32
    %c0_i32_0 = arith.constant 0 : i32
    %c0_i32_1 = arith.constant 0 : i32
    return %c0_i32, %c0_i32_0 : i32, i32
  }
  func.func @transform_9(%arg0: i32) -> (i32, i32) {
    %c0_i32 = arith.constant 0 : i32
    %c0_i32_0 = arith.constant 0 : i32
    return %arg0, %c0_i32 : i32, i32
  }
}

</mosaic_0001>

<llo_original>
// kernel: tpu_custom_call.1
$region0: #{tpu_custom_call.1}
  #allocation0 [shape = 'u32[]', space=smem, size = 0x4, offset = 0x4, fixed_abs, tag = 'smem constant byte address 0x4 - core index']
  #allocation1 [shape = 'u32[144,128]{1,0:T(1,128)}', space=vmem, size = 0x12000, scoped, tag = 'internal scratch']
  %s0 = inlined_call_operand.vmem [shape: f32[16,49], index: 0, kind: input, shape index: {}]
  %s1 = inlined_call_operand.vmem [shape: bf16[49,400], index: 1, kind: input, shape index: {}]
  %s2 = inlined_call_operand.hbm [shape: f32[1,400], index: 2, kind: input, shape index: {}]
  %s3 = inlined_call_operand.hbm [shape: bf16[400,200], index: 3, kind: input, shape index: {}]
  %s4 = inlined_call_operand.vmem [shape: f32[1,200], index: 4, kind: input, shape index: {}]
  %s5 = inlined_call_operand.vmem [shape: bf16[200,50], index: 5, kind: input, shape index: {}]
  %s6 = inlined_call_operand.vmem [shape: f32[1,50], index: 6, kind: input, shape index: {}]
  %s7 = inlined_call_operand.vmem [shape: bf16[50,128], index: 7, kind: input, shape index: {}]
  %s8 = inlined_call_operand.vmem [shape: f32[1,128], index: 8, kind: input, shape index: {}]
  %s9 = inlined_call_operand.hbm [shape: f32[16,128], index: 9, kind: output, shape index: {}]
  %s10 = sld [smem:[#allocation0]]
  $region54: #{tpu_custom_call.1} parent=0
    _
  %s12 = ssub.s32 1, %s10
  %s13 = scalar_select 0, %s12, %s10
  $region1: #{tpu_custom_call.1} parent=0
    #allocation2 [shape = 'u8[2048]{0}', space=vmem, size = 0x800, scoped, tag = 'input window, operand 2, single buffered']
    #allocation3 [shape = 's32[1]{0}', space=sflag, size = 0x4, scoped, tag = 'scoped memory for tpu_custom_call.1']
    #allocation4 [shape = 's32[1]{0}', space=sflag, size = 0x4, scoped, tag = 'scoped memory for tpu_custom_call.1']
    #allocation5 [shape = 'u8[204800]{0}', space=vmem, size = 0x32000, scoped, tag = 'input window, operand 3, single buffered']
    #allocation6 [shape = 's32[1]{0}', space=sflag, size = 0x4, scoped, tag = 'scoped memory for tpu_custom_call.1']
    #allocation7 [shape = 'u8[8192]{0}', space=vmem, size = 0x2000, scoped, tag = 'output window, operand 0, single buffered']
    %14 = vsyncpa [#allocation3], 0
    %15 = vsyncpa [#allocation6], 0
    %16 = vsyncpa [#allocation4], 0
    // Predicated region
    $region2: #{tpu_custom_call.1} parent=1 // pred_check
      _
    $region3: #{tpu_custom_call.1} parent=1 // pred_check_branch
      %18 = sbr.rel (0) target = $region5
    $region4: #{tpu_custom_call.1} parent=1 // pred_region
      _
    $region5: #{tpu_custom_call.1} parent=1 // pred_fallthru
      _
    // Predicated region
    $region6: #{tpu_custom_call.1} parent=1 // pred_check
      _
    $region7: #{tpu_custom_call.1} parent=1 // pred_check_branch
      %20 = sbr.rel (0) target = $region9
    $region8: #{tpu_custom_call.1} parent=1 // pred_region
      _
    $region9: #{tpu_custom_call.1} parent=1 // pred_fallthru
      _
    // Predicated region
    $region10: #{tpu_custom_call.1} parent=1 // pred_check
      _
    $region11: #{tpu_custom_call.1} parent=1 // pred_check_branch
      %22 = sbr.rel (0) target = $region13
    $region12: #{tpu_custom_call.1} parent=1 // pred_region
      %s24 = ssub.s32 64, 64
      %25 = vsyncadd [#allocation3], %s24
      %s27 = sshll.u32 [#allocation2], 4
      %s28 = int_to_ptr.vmem [resolvable:$true] %s27
      %30 = dma.hbm_to_vmem [thread:$0]  %s2, 64, %s28, [#allocation3]
    $region13: #{tpu_custom_call.1} parent=1 // pred_fallthru
      _
    // Predicated region
    $region14: #{tpu_custom_call.1} parent=1 // pred_check
      _
    $region15: #{tpu_custom_call.1} parent=1 // pred_check_branch
      %32 = sbr.rel (0) target = $region17
    $region16: #{tpu_custom_call.1} parent=1 // pred_region
      %s34 = ssub.s32 6400, 6400
      %35 = vsyncadd [#allocation6], %s34
      %s36 = sshll.u32 [#allocation5], 4
      %s37 = int_to_ptr.vmem [resolvable:$true] %s36
      %42 = dma.hbm_to_vmem [thread:$0]  %s3, 6400, %s37, [#allocation6], 128, 128, 8
    $region17: #{tpu_custom_call.1} parent=1 // pred_fallthru
      _
    // Predicated region
    $region18: #{tpu_custom_call.1} parent=1 // pred_check
      _
    $region19: #{tpu_custom_call.1} parent=1 // pred_check_branch
      %44 = sbr.rel (0) target = $region21
    $region20: #{tpu_custom_call.1} parent=1 // pred_region
      _
    $region21: #{tpu_custom_call.1} parent=1 // pred_fallthru
      _
    // Predicated region
    $region22: #{tpu_custom_call.1} parent=1 // pred_check
      _
    $region23: #{tpu_custom_call.1} parent=1 // pred_check_branch
      %46 = sbr.rel (0) target = $region25
    $region24: #{tpu_custom_call.1} parent=1 // pred_region
      _
    $region25: #{tpu_custom_call.1} parent=1 // pred_fallthru
      _
    // Predicated region
    $region26: #{tpu_custom_call.1} parent=1 // pred_check
      _
    $region27: #{tpu_custom_call.1} parent=1 // pred_check_branch
      %48 = sbr.rel (0) target = $region29
    $region28: #{tpu_custom_call.1} parent=1 // pred_region
      _
    $region29: #{tpu_custom_call.1} parent=1 // pred_fallthru
      _
    // Predicated region
    $region30: #{tpu_custom_call.1} parent=1 // pred_check
      _
    $region31: #{tpu_custom_call.1} parent=1 // pred_check_branch
      %50 = sbr.rel (0) target = $region33
    $region32: #{tpu_custom_call.1} parent=1 // pred_region
      _
    $region33: #{tpu_custom_call.1} parent=1 // pred_fallthru
      _
    // Predicated region
    $region34: #{tpu_custom_call.1} parent=1 // pred_check
      _
    $region35: #{tpu_custom_call.1} parent=1 // pred_check_branch
      %52 = sbr.rel (0) target = $region37
    $region36: #{tpu_custom_call.1} parent=1 // pred_region
      _
    $region37: #{tpu_custom_call.1} parent=1 // pred_fallthru
      _
    // Predicated region
    $region38: #{tpu_custom_call.1} parent=1 // pred_check
      _
    $region39: #{tpu_custom_call.1} parent=1 // pred_check_branch
      %54 = sbr.rel (0) target = $region41
    $region40: #{tpu_custom_call.1} parent=1 // pred_region
      %55 = dma.done [#allocation3], 64
    $region41: #{tpu_custom_call.1} parent=1 // pred_fallthru
      _
    // Predicated region
    $region42: #{tpu_custom_call.1} parent=1 // pred_check
      _
    $region43: #{tpu_custom_call.1} parent=1 // pred_check_branch
      %57 = sbr.rel (0) target = $region45
    $region44: #{tpu_custom_call.1} parent=1 // pred_region
      %58 = dma.done [#allocation6], 6400
    $region45: #{tpu_custom_call.1} parent=1 // pred_fallthru
      _
    %v60 = vld [vmem:[%s0] sm:$0xff]
    %v61 = vld [vmem:[%s0 + $0x8] sm:$0xff]
    %v62 = vpack.c.bf16 %v61, %v60
    %v63 = vld [vmem:[%s1] sm:$0xff]
    %v64 = vld [vmem:[%s1 + $0x8] sm:$0xff]
    %v65 = vld [vmem:[%s1 + $0x10] sm:$0xff]
    %v66 = vld [vmem:[%s1 + $0x18] sm:$0xff]
    %v67 = vld [vmem:[%s1 + $0x20] sm:$0xff]
    %v68 = vld [vmem:[%s1 + $0x28] sm:$0xff]
    %v69 = vld [vmem:[%s1 + $0x30] sm:$0xff]
    %v70 = vld [vmem:[%s1 + $0x38] sm:$0xff]
    %v71 = vld [vmem:[%s1 + $0x40] sm:$0xff]
    %v72 = vld [vmem:[%s1 + $0x48] sm:$0xff]
    %v73 = vld [vmem:[%s1 + $0x50] sm:$0xff]
    %v74 = vld [vmem:[%s1 + $0x58] sm:$0xff]
    %v75 = vld [vmem:[%s1 + $0x60] sm:$0x11]
    %v76 = vld [vmem:[%s1 + $0x68] sm:$0x11]
    %v77 = vld [vmem:[#allocation2] sm:$0xf]
    %v79 = vlaneseq
    %v80 = vshrl.u32 %v79, 7
    %v81 = vsub.s32 0, %v80
    %v82 = vrot.slane %v77, %v81
    %v83 = vlaneseq
    %v84 = vshrl.u32 %v83, 7
    %v85 = vsub.s32 1, %v84
    %v86 = vrot.slane %v77, %v85
    %v87 = vlaneseq
    %v88 = vshrl.u32 %v87, 7
    %v89 = vsub.s32 2, %v88
    %v90 = vrot.slane %v77, %v89
    %v91 = vlaneseq
    %v92 = vshrl.u32 %v91, 7
    %v93 = vsub.s32 3, %v92
    %v94 = vrot.slane %v77, %v93
    %v113 = vunpack.c.l.b16 %v63
    %v114 = vunpack.c.h.b16 %v63
    %v115 = vunpack.c.l.b16 %v64
    %v116 = vunpack.c.h.b16 %v64
    %v117 = vunpack.c.l.b16 %v65
    %v118 = vunpack.c.h.b16 %v65
    %v119 = vunpack.c.l.b16 %v66
    %v120 = vunpack.c.h.b16 %v66
    %v121 = vunpack.c.l.b16 %v67
    %v122 = vunpack.c.h.b16 %v67
    %v123 = vunpack.c.l.b16 %v68
    %v124 = vunpack.c.h.b16 %v68
    %v125 = vunpack.c.l.b16 %v69
    %v126 = vunpack.c.h.b16 %v69
    %v127 = vunpack.c.l.b16 %v70
    %v128 = vunpack.c.h.b16 %v70
    %v129 = vunpack.c.l.b16 %v71
    %v130 = vunpack.c.h.b16 %v71
    %v131 = vunpack.c.l.b16 %v72
    %v132 = vunpack.c.h.b16 %v72
    %v133 = vunpack.c.l.b16 %v73
    %v134 = vunpack.c.h.b16 %v73
    %v135 = vunpack.c.l.b16 %v74
    %v136 = vunpack.c.h.b16 %v74
    %v137 = vunpack.c.l.b16 %v75
    %v138 = vunpack.c.h.b16 %v75
    %v139 = vunpack.c.l.b16 %v76
    %v140 = vunpack.c.h.b16 %v76
    %v141 = vpack.c.b16 %v117, %v113
    %v142 = vpack.c.b16 %v118, %v114
    %v143 = vpack.c.b16 %v119, %v115
    %v144 = vpack.c.b16 %v120, %v116
    %v145 = vpack.c.b16 %v125, %v121
    %v146 = vpack.c.b16 %v126, %v122
    %v147 = vpack.c.b16 %v127, %v123
    %v148 = vpack.c.b16 %v128, %v124
    %v149 = vpack.c.b16 %v133, %v129
    %v150 = vpack.c.b16 %v134, %v130
    %v151 = vpack.c.b16 %v135, %v131
    %v152 = vpack.c.b16 %v136, %v132
    %v153 = vpack.c.b16 %v137, %v137
    %v154 = vpack.c.b16 %v138, %v138
    %v155 = vpack.c.b16 %v139, %v139
    %v156 = vpack.c.b16 %v140, %v140
    %vm169 = vcmask 400384
    %v171 = vsel %vm169, %v62, 0
    %vm173 = vcmask 1040384
    %v174 = vsel 0, 4294967295, 65535
    %v175 = vsel %vm173, %v174, 0
    %v177 = vand.u32 %v153, %v175
    %v180 = vand.u32 %v154, %v175
    %v183 = vand.u32 %v155, %v175
    %v186 = vand.u32 %v156, %v175
    %188 = vmatprep.subr.bf16.mxu0 0
    %189 = vmatpush1.bf16.msra.mxu0 0
    %190 = vmatprep.subr.bf16.mxu0 0
    %191 = vmatpush1.bf16.msra.mxu0 0
    %192 = vmatprep.subr.bf16.mxu0 0
    %193 = vmatpush1.bf16.msra.mxu0 0
    %194 = vmatprep.subr.bf16.mxu0 0
    %195 = vmatpush1.bf16.msra.mxu0 0
    %196 = vmatprep.subr.bf16.mxu0 %v180
    %197 = vmatpush1.bf16.msra.mxu0 %v177
    %198 = vmatprep.subr.bf16.mxu0 %v150
    %199 = vmatpush1.bf16.msra.mxu0 %v149
    %200 = vmatprep.subr.bf16.mxu0 %v146
    %201 = vmatpush1.bf16.msra.mxu0 %v145
    %202 = vmatprep.subr.bf16.mxu0 %v142
    %203 = vmatpush1.bf16.msra.mxu0 %v141
    %204 = vmatprep.subr.bf16.mxu0 0
    %205 = vmatpush2.bf16.msra.mxu0 0
    %206 = vmatprep.subr.bf16.mxu0 0
    %207 = vmatpush2.bf16.msra.mxu0 0
    %208 = vmatprep.subr.bf16.mxu0 0
    %209 = vmatpush2.bf16.msra.mxu0 0
    %210 = vmatprep.subr.bf16.mxu0 0
    %211 = vmatpush2.bf16.msra.mxu0 0
    %212 = vmatprep.subr.bf16.mxu0 0
    %213 = vmatpush2.bf16.msra.mxu0 0
    %214 = vmatprep.subr.bf16.mxu0 0
    %215 = vmatpush2.bf16.msra.mxu0 0
    %216 = vmatprep.subr.bf16.mxu0 0
    %217 = vmatpush2.bf16.msra.mxu0 0
    %218 = vmatprep.subr.bf16.mxu0 0
    %219 = vmatpush2.bf16.msra.mxu0 0
    %220 = vmatprep.mubr.bf16.mxu0 0
    %221 = vmatmul.mubr.bf16.gmra.mxu0 %v171
    %v222 = vpop.f32.mrf.mxu0
    %v223 = vadd.f32 %v82, %v222
    %v224 = vpop.f32.mrf.mxu0
    %v225 = vadd.f32 %v86, %v224
    %v226 = vpop.f32.mrf.mxu0
    %v227 = vadd.f32 %v82, %v226
    %v228 = vpop.f32.mrf.mxu0
    %v229 = vadd.f32 %v86, %v228
    %230 = vdwg.mxu0
    %231 = vmatprep.subr.bf16.mxu0 0
    %232 = vmatpush1.bf16.msra.mxu0 0
    %233 = vmatprep.subr.bf16.mxu0 0
    %234 = vmatpush1.bf16.msra.mxu0 0
    %235 = vmatprep.subr.bf16.mxu0 0
    %236 = vmatpush1.bf16.msra.mxu0 0
    %237 = vmatprep.subr.bf16.mxu0 0
    %238 = vmatpush1.bf16.msra.mxu0 0
    %239 = vmatprep.subr.bf16.mxu0 %v186
    %240 = vmatpush1.bf16.msra.mxu0 %v183
    %241 = vmatprep.subr.bf16.mxu0 %v152
    %242 = vmatpush1.bf16.msra.mxu0 %v151
    %243 = vmatprep.subr.bf16.mxu0 %v148
    %244 = vmatpush1.bf16.msra.mxu0 %v147
    %245 = vmatprep.subr.bf16.mxu0 %v144
    %246 = vmatpush1.bf16.msra.mxu0 %v143
    %247 = vmatprep.subr.bf16.mxu0 0
    %248 = vmatpush2.bf16.msra.mxu0 0
    %249 = vmatprep.subr.bf16.mxu0 0
    %250 = vmatpush2.bf16.msra.mxu0 0
    %251 = vmatprep.subr.bf16.mxu0 0
    %252 = vmatpush2.bf16.msra.mxu0 0
    %253 = vmatprep.subr.bf16.mxu0 0
    %254 = vmatpush2.bf16.msra.mxu0 0
    %255 = vmatprep.subr.bf16.mxu0 0
    %256 = vmatpush2.bf16.msra.mxu0 0
    %257 = vmatprep.subr.bf16.mxu0 0
    %258 = vmatpush2.bf16.msra.mxu0 0
    %259 = vmatprep.subr.bf16.mxu0 0
    %260 = vmatpush2.bf16.msra.mxu0 0
    %261 = vmatprep.subr.bf16.mxu0 0
    %262 = vmatpush2.bf16.msra.mxu0 0
    %263 = vmatprep.mubr.bf16.mxu0 0
    %264 = vmatmul.mubr.bf16.gmra.mxu0 %v171
    %v265 = vpop.f32.mrf.mxu0
    %v266 = vadd.f32 %v90, %v265
    %v267 = vpop.f32.mrf.mxu0
    %v268 = vadd.f32 %v94, %v267
    %v269 = vpop.f32.mrf.mxu0
    %v270 = vadd.f32 %v90, %v269
    %v271 = vpop.f32.mrf.mxu0
    %v272 = vadd.f32 %v94, %v271
    %273 = vdwg.mxu0
    %v274 = vmax.f32 %v223, 0.0
    %v275 = vmax.f32 %v225, 0.0
    %v276 = vmax.f32 %v266, 0.0
    %v277 = vmax.f32 %v268, 0.0
    %v278 = vmax.f32 %v227, 0.0
    %v279 = vmax.f32 %v229, 0.0
    %v280 = vmax.f32 %v270, 0.0
    %v281 = vmax.f32 %v272, 0.0
    %v282 = vpack.c.bf16 %v278, %v274
    %v283 = vpack.c.bf16 %v279, %v275
    %v284 = vpack.c.bf16 %v280, %v276
    %v285 = vpack.c.bf16 %v281, %v277
    %v286 = vld [vmem:[#allocation5] sm:$0xff]
    %v287 = vld [vmem:[#allocation5 + $0x8] sm:$0xff]
    %v288 = vld [vmem:[#allocation5 + $0x10] sm:$0xff]
    %v289 = vld [vmem:[#allocation5 + $0x18] sm:$0xff]
    %v290 = vld [vmem:[#allocation5 + $0x20] sm:$0xff]
    %v291 = vld [vmem:[#allocation5 + $0x28] sm:$0xff]
    %v292 = vld [vmem:[#allocation5 + $0x30] sm:$0xff]
    %v293 = vld [vmem:[#allocation5 + $0x38] sm:$0xff]
    %v294 = vld [vmem:[#allocation5 + $0x40] sm:$0xff]
    %v295 = vld [vmem:[#allocation5 + $0x48] sm:$0xff]
    %v296 = vld [vmem:[#allocation5 + $0x50] sm:$0xff]
    %v297 = vld [vmem:[#allocation5 + $0x58] sm:$0xff]
    %v298 = vld [vmem:[#allocation5 + $0x60] sm:$0xff]
    %v299 = vld [vmem:[#allocation5 + $0x68] sm:$0xff]
    %v300 = vld [vmem:[#allocation5 + $0x70] sm:$0xff]
    %v301 = vld [vmem:[#allocation5 + $0x78] sm:$0xff]
    %v302 = vld [vmem:[#allocation5 + $0x80] sm:$0xff]
    %v303 = vld [vmem:[#allocation5 + $0x88] sm:$0xff]
    %v304 = vld [vmem:[#allocation5 + $0x90] sm:$0xff]
    %v305 = vld [vmem:[#allocation5 + $0x98] sm:$0xff]
    %v306 = vld [vmem:[#allocation5 + $0xa0] sm:$0xff]
    %v307 = vld [vmem:[#allocation5 + $0xa8] sm:$0xff]
    %v308 = vld [vmem:[#allocation5 + $0xb0] sm:$0xff]
    %v309 = vld [vmem:[#allocation5 + $0xb8] sm:$0xff]
    %v310 = vld [vmem:[#allocation5 + $0xc0] sm:$0xff]
    %v311 = vld [vmem:[#allocation5 + $0xc8] sm:$0xff]
    %v312 = vld [vmem:[#allocation5 + $0xd0] sm:$0xff]
    %v313 = vld [vmem:[#allocation5 + $0xd8] sm:$0xff]
    %v314 = vld [vmem:[#allocation5 + $0xe0] sm:$0xff]
    %v315 = vld [vmem:[#allocation5 + $0xe8] sm:$0xff]
    %v316 = vld [vmem:[#allocation5 + $0xf0] sm:$0xff]
    %v317 = vld [vmem:[#allocation5 + $0xf8] sm:$0xff]
    %v318 = vld [vmem:[#allocation5 + $0x100] sm:$0xff]
    %v319 = vld [vmem:[#allocation5 + $0x108] sm:$0xff]
    %v320 = vld [vmem:[#allocation5 + $0x110] sm:$0xff]
    %v321 = vld [vmem:[#allocation5 + $0x118] sm:$0xff]
    %v322 = vld [vmem:[#allocation5 + $0x120] sm:$0xff]
    %v323 = vld [vmem:[#allocation5 + $0x128] sm:$0xff]
    %v324 = vld [vmem:[#allocation5 + $0x130] sm:$0xff]
    %v325 = vld [vmem:[#allocation5 + $0x138] sm:$0xff]
    %v326 = vld [vmem:[#allocation5 + $0x140] sm:$0xff]
    %v327 = vld [vmem:[#allocation5 + $0x148] sm:$0xff]
    %v328 = vld [vmem:[#allocation5 + $0x150] sm:$0xff]
    %v329 = vld [vmem:[#allocation5 + $0x158] sm:$0xff]
    %v330 = vld [vmem:[#allocation5 + $0x160] sm:$0xff]
    %v331 = vld [vmem:[#allocation5 + $0x168] sm:$0xff]
    %v332 = vld [vmem:[#allocation5 + $0x170] sm:$0xff]
    %v333 = vld [vmem:[#allocation5 + $0x178] sm:$0xff]
    %v334 = vld [vmem:[#allocation5 + $0x180] sm:$0xff]
    %v335 = vld [vmem:[#allocation5 + $0x188] sm:$0xff]
    %v336 = vld [vmem:[%s4] sm:$0x3]
    %v338 = vlaneseq
    %v339 = vshrl.u32 %v338, 7
    %v340 = vsub.s32 0, %v339
    %v341 = vrot.slane %v336, %v340
    %v342 = vlaneseq
    %v343 = vshrl.u32 %v342, 7
    %v344 = vsub.s32 1, %v343
    %v345 = vrot.slane %v336, %v344
    %v398 = vunpack.c.l.b16 %v286
    %v399 = vunpack.c.h.b16 %v286
    %v400 = vunpack.c.l.b16 %v287
    %v401 = vunpack.c.h.b16 %v287
    %v402 = vunpack.c.l.b16 %v288
    %v403 = vunpack.c.h.b16 %v288
    %v404 = vunpack.c.l.b16 %v289
    %v405 = vunpack.c.h.b16 %v289
    %v406 = vunpack.c.l.b16 %v290
    %v407 = vunpack.c.h.b16 %v290
    %v408 = vunpack.c.l.b16 %v291
    %v409 = vunpack.c.h.b16 %v291
    %v410 = vunpack.c.l.b16 %v292
    %v411 = vunpack.c.h.b16 %v292
    %v412 = vunpack.c.l.b16 %v293
    %v413 = vunpack.c.h.b16 %v293
    %v414 = vunpack.c.l.b16 %v294
    %v415 = vunpack.c.h.b16 %v294
    %v416 = vunpack.c.l.b16 %v295
    %v417 = vunpack.c.h.b16 %v295
    %v418 = vunpack.c.l.b16 %v296
    %v419 = vunpack.c.h.b16 %v296
    %v420 = vunpack.c.l.b16 %v297
    %v421 = vunpack.c.h.b16 %v297
    %v422 = vunpack.c.l.b16 %v298
    %v423 = vunpack.c.h.b16 %v298
    %v424 = vunpack.c.l.b16 %v299
    %v425 = vunpack.c.h.b16 %v299
    %v426 = vunpack.c.l.b16 %v300
    %v427 = vunpack.c.h.b16 %v300
    %v428 = vunpack.c.l.b16 %v301
    %v429 = vunpack.c.h.b16 %v301
    %v430 = vunpack.c.l.b16 %v302
    %v431 = vunpack.c.h.b16 %v302
    %v432 = vunpack.c.l.b16 %v303
    %v433 = vunpack.c.h.b16 %v303
    %v434 = vunpack.c.l.b16 %v304
    %v435 = vunpack.c.h.b16 %v304
    %v436 = vunpack.c.l.b16 %v305
    %v437 = vunpack.c.h.b16 %v305
    %v438 = vunpack.c.l.b16 %v306
    %v439 = vunpack.c.h.b16 %v306
    %v440 = vunpack.c.l.b16 %v307
    %v441 = vunpack.c.h.b16 %v307
    %v442 = vunpack.c.l.b16 %v308
    %v443 = vunpack.c.h.b16 %v308
    %v444 = vunpack.c.l.b16 %v309
    %v445 = vunpack.c.h.b16 %v309
    %v446 = vunpack.c.l.b16 %v310
    %v447 = vunpack.c.h.b16 %v310
    %v448 = vunpack.c.l.b16 %v311
    %v449 = vunpack.c.h.b16 %v311
    %v450 = vunpack.c.l.b16 %v312
    %v451 = vunpack.c.h.b16 %v312
    %v452 = vunpack.c.l.b16 %v313
    %v453 = vunpack.c.h.b16 %v313
    %v454 = vunpack.c.l.b16 %v314
    %v455 = vunpack.c.h.b16 %v314
    %v456 = vunpack.c.l.b16 %v315
    %v457 = vunpack.c.h.b16 %v315
    %v458 = vunpack.c.l.b16 %v316
    %v459 = vunpack.c.h.b16 %v316
    %v460 = vunpack.c.l.b16 %v317
    %v461 = vunpack.c.h.b16 %v317
    %v462 = vunpack.c.l.b16 %v318
    %v463 = vunpack.c.h.b16 %v318
    %v464 = vunpack.c.l.b16 %v319
    %v465 = vunpack.c.h.b16 %v319
    %v466 = vunpack.c.l.b16 %v320
    %v467 = vunpack.c.h.b16 %v320
    %v468 = vunpack.c.l.b16 %v321
    %v469 = vunpack.c.h.b16 %v321
    %v470 = vunpack.c.l.b16 %v322
    %v471 = vunpack.c.h.b16 %v322
    %v472 = vunpack.c.l.b16 %v323
    %v473 = vunpack.c.h.b16 %v323
    %v474 = vunpack.c.l.b16 %v324
    %v475 = vunpack.c.h.b16 %v324
    %v476 = vunpack.c.l.b16 %v325
    %v477 = vunpack.c.h.b16 %v325
    %v478 = vunpack.c.l.b16 %v326
    %v479 = vunpack.c.h.b16 %v326
    %v480 = vunpack.c.l.b16 %v327
    %v481 = vunpack.c.h.b16 %v327
    %v482 = vunpack.c.l.b16 %v328
    %v483 = vunpack.c.h.b16 %v328
    %v484 = vunpack.c.l.b16 %v329
    %v485 = vunpack.c.h.b16 %v329
    %v486 = vunpack.c.l.b16 %v330
    %v487 = vunpack.c.h.b16 %v330
    %v488 = vunpack.c.l.b16 %v331
    %v489 = vunpack.c.h.b16 %v331
    %v490 = vunpack.c.l.b16 %v332
    %v491 = vunpack.c.h.b16 %v332
    %v492 = vunpack.c.l.b16 %v333
    %v493 = vunpack.c.h.b16 %v333
    %v494 = vunpack.c.l.b16 %v334
    %v495 = vunpack.c.h.b16 %v334
    %v496 = vunpack.c.l.b16 %v335
    %v497 = vunpack.c.h.b16 %v335
    %v498 = vpack.c.b16 %v400, %v398
    %v499 = vpack.c.b16 %v401, %v399
    %v500 = vpack.c.b16 %v404, %v402
    %v501 = vpack.c.b16 %v405, %v403
    %v502 = vpack.c.b16 %v408, %v406
    %v503 = vpack.c.b16 %v409, %v407
    %v504 = vpack.c.b16 %v412, %v410
    %v505 = vpack.c.b16 %v413, %v411
    %v506 = vpack.c.b16 %v416, %v414
    %v507 = vpack.c.b16 %v417, %v415
    %v508 = vpack.c.b16 %v420, %v418
    %v509 = vpack.c.b16 %v421, %v419
    %v510 = vpack.c.b16 %v424, %v422
    %v511 = vpack.c.b16 %v425, %v423
    %v512 = vpack.c.b16 %v428, %v426
    %v513 = vpack.c.b16 %v429, %v427
    %v514 = vpack.c.b16 %v432, %v430
    %v515 = vpack.c.b16 %v433, %v431
    %v516 = vpack.c.b16 %v436, %v434
    %v517 = vpack.c.b16 %v437, %v435
    %v518 = vpack.c.b16 %v440, %v438
    %v519 = vpack.c.b16 %v441, %v439
    %v520 = vpack.c.b16 %v444, %v442
    %v521 = vpack.c.b16 %v445, %v443
    %v522 = vpack.c.b16 %v448, %v446
    %v523 = vpack.c.b16 %v449, %v447
    %v524 = vpack.c.b16 %v452, %v450
    %v525 = vpack.c.b16 %v453, %v451
    %v526 = vpack.c.b16 %v456, %v454
    %v527 = vpack.c.b16 %v457, %v455
    %v528 = vpack.c.b16 %v460, %v458
    %v529 = vpack.c.b16 %v461, %v459
    %v530 = vpack.c.b16 %v464, %v462
    %v531 = vpack.c.b16 %v465, %v463
    %v532 = vpack.c.b16 %v468, %v466
    %v533 = vpack.c.b16 %v469, %v467
    %v534 = vpack.c.b16 %v472, %v470
    %v535 = vpack.c.b16 %v473, %v471
    %v536 = vpack.c.b16 %v476, %v474
    %v537 = vpack.c.b16 %v477, %v475
    %v538 = vpack.c.b16 %v480, %v478
    %v539 = vpack.c.b16 %v481, %v479
    %v540 = vpack.c.b16 %v484, %v482
    %v541 = vpack.c.b16 %v485, %v483
    %v542 = vpack.c.b16 %v488, %v486
    %v543 = vpack.c.b16 %v489, %v487
    %v544 = vpack.c.b16 %v492, %v490
    %v545 = vpack.c.b16 %v493, %v491
    %v546 = vpack.c.b16 %v496, %v494
    %v547 = vpack.c.b16 %v497, %v495
    %vm598 = vcmask 130048
    %v600 = vsel %vm598, %v285, 0
    %602 = vmatprep.subr.bf16.mxu0 %v513
    %603 = vmatpush1.bf16.msra.mxu0 %v512
    %604 = vmatprep.subr.bf16.mxu0 %v511
    %605 = vmatpush1.bf16.msra.mxu0 %v510
    %606 = vmatprep.subr.bf16.mxu0 %v509
    %607 = vmatpush1.bf16.msra.mxu0 %v508
    %608 = vmatprep.subr.bf16.mxu0 %v507
    %609 = vmatpush1.bf16.msra.mxu0 %v506
    %610 = vmatprep.subr.bf16.mxu0 %v505
    %611 = vmatpush1.bf16.msra.mxu0 %v504
    %612 = vmatprep.subr.bf16.mxu0 %v503
    %613 = vmatpush1.bf16.msra.mxu0 %v502
    %614 = vmatprep.subr.bf16.mxu0 %v501
    %615 = vmatpush1.bf16.msra.mxu0 %v500
    %616 = vmatprep.subr.bf16.mxu0 %v499
    %617 = vmatpush1.bf16.msra.mxu0 %v498
    %618 = vmatprep.subr.bf16.mxu0 %v529
    %619 = vmatpush2.bf16.msra.mxu0 %v528
    %620 = vmatprep.subr.bf16.mxu0 %v527
    %621 = vmatpush2.bf16.msra.mxu0 %v526
    %622 = vmatprep.subr.bf16.mxu0 %v525
    %623 = vmatpush2.bf16.msra.mxu0 %v524
    %624 = vmatprep.subr.bf16.mxu0 %v523
    %625 = vmatpush2.bf16.msra.mxu0 %v522
    %626 = vmatprep.subr.bf16.mxu0 %v521
    %627 = vmatpush2.bf16.msra.mxu0 %v520
    %628 = vmatprep.subr.bf16.mxu0 %v519
    %629 = vmatpush2.bf16.msra.mxu0 %v518
    %630 = vmatprep.subr.bf16.mxu0 %v517
    %631 = vmatpush2.bf16.msra.mxu0 %v516
    %632 = vmatprep.subr.bf16.mxu0 %v515
    %633 = vmatpush2.bf16.msra.mxu0 %v514
    %634 = vmatprep.mubr.bf16.mxu0 %v283
    %635 = vmatmul.mubr.bf16.gmra.mxu0 %v282
    %v636 = vpop.f32.mrf.mxu0
    %v637 = vadd.f32 %v341, %v636
    %v638 = vpop.f32.mrf.mxu0
    %v639 = vadd.f32 %v345, %v638
    %v640 = vpop.f32.mrf.mxu0
    %v641 = vadd.f32 %v341, %v640
    %v642 = vpop.f32.mrf.mxu0
    %v643 = vadd.f32 %v345, %v642
    %644 = vdwg.mxu0
    %645 = vmatprep.subr.bf16.mxu0 %v545
    %646 = vmatpush1.bf16.msra.mxu0 %v544
    %647 = vmatprep.subr.bf16.mxu0 %v543
    %648 = vmatpush1.bf16.msra.mxu0 %v542
    %649 = vmatprep.subr.bf16.mxu0 %v541
    %650 = vmatpush1.bf16.msra.mxu0 %v540
    %651 = vmatprep.subr.bf16.mxu0 %v539
    %652 = vmatpush1.bf16.msra.mxu0 %v538
    %653 = vmatprep.subr.bf16.mxu0 %v537
    %654 = vmatpush1.bf16.msra.mxu0 %v536
    %655 = vmatprep.subr.bf16.mxu0 %v535
    %656 = vmatpush1.bf16.msra.mxu0 %v534
    %657 = vmatprep.subr.bf16.mxu0 %v533
    %658 = vmatpush1.bf16.msra.mxu0 %v532
    %659 = vmatprep.subr.bf16.mxu0 %v531
    %660 = vmatpush1.bf16.msra.mxu0 %v530
    %661 = vmatprep.subr.bf16.mxu0 0
    %662 = vmatpush2.bf16.msra.mxu0 0
    %663 = vmatprep.subr.bf16.mxu0 0
    %664 = vmatpush2.bf16.msra.mxu0 0
    %665 = vmatprep.subr.bf16.mxu0 0
    %666 = vmatpush2.bf16.msra.mxu0 0
    %667 = vmatprep.subr.bf16.mxu0 0
    %668 = vmatpush2.bf16.msra.mxu0 0
    %669 = vmatprep.subr.bf16.mxu0 0
    %670 = vmatpush2.bf16.msra.mxu0 0
    %671 = vmatprep.subr.bf16.mxu0 0
    %672 = vmatpush2.bf16.msra.mxu0 0
    %673 = vmatprep.subr.bf16.mxu0 0
    %674 = vmatpush2.bf16.msra.mxu0 0
    %675 = vmatprep.subr.bf16.mxu0 %v547
    %676 = vmatpush2.bf16.msra.mxu0 %v546
    %677 = vmatprep.mubr.bf16.mxu0 %v600
    %678 = vmatmul.mubr.bf16.gmra.mxu0 %v284
    %v679 = vpop.f32.mrf.mxu0
    %v680 = vadd.f32 %v637, %v679
    %v681 = vpop.f32.mrf.mxu0
    %v682 = vadd.f32 %v639, %v681
    %v683 = vpop.f32.mrf.mxu0
    %v684 = vadd.f32 %v641, %v683
    %v685 = vpop.f32.mrf.mxu0
    %v686 = vadd.f32 %v643, %v685
    %687 = vdwg.mxu0
    %v688 = vmax.f32 %v680, 0.0
    %v689 = vmax.f32 %v682, 0.0
    %v690 = vmax.f32 %v684, 0.0
    %v691 = vmax.f32 %v686, 0.0
    %v692 = vpack.c.bf16 %v690, %v688
    %v693 = vpack.c.bf16 %v691, %v689
    %v694 = vld [vmem:[%s5] sm:$0xf]
    %v695 = vld [vmem:[%s5 + $0x4] sm:$0xf]
    %v696 = vld [vmem:[%s5 + $0x8] sm:$0xf]
    %v697 = vld [vmem:[%s5 + $0xc] sm:$0xf]
    %v698 = vld [vmem:[%s5 + $0x10] sm:$0xf]
    %v699 = vld [vmem:[%s5 + $0x14] sm:$0xf]
    %v700 = vld [vmem:[%s5 + $0x18] sm:$0xf]
    %v701 = vld [vmem:[%s5 + $0x1c] sm:$0xf]
    %v702 = vld [vmem:[%s5 + $0x20] sm:$0xf]
    %v703 = vld [vmem:[%s5 + $0x24] sm:$0xf]
    %v704 = vld [vmem:[%s5 + $0x28] sm:$0xf]
    %v705 = vld [vmem:[%s5 + $0x2c] sm:$0xf]
    %v706 = vld [vmem:[%s5 + $0x30] sm:$0xf]
    %v707 = vld [vmem:[%s5 + $0x34] sm:$0xf]
    %v708 = vld [vmem:[%s5 + $0x38] sm:$0xf]
    %v709 = vld [vmem:[%s5 + $0x3c] sm:$0xf]
    %v710 = vld [vmem:[%s5 + $0x40] sm:$0xf]
    %v711 = vld [vmem:[%s5 + $0x44] sm:$0xf]
    %v712 = vld [vmem:[%s5 + $0x48] sm:$0xf]
    %v713 = vld [vmem:[%s5 + $0x4c] sm:$0xf]
    %v714 = vld [vmem:[%s5 + $0x50] sm:$0xf]
    %v715 = vld [vmem:[%s5 + $0x54] sm:$0xf]
    %v716 = vld [vmem:[%s5 + $0x58] sm:$0xf]
    %v717 = vld [vmem:[%s5 + $0x5c] sm:$0xf]
    %v718 = vld [vmem:[%s5 + $0x60] sm:$0xf]
    %v719 = vld [vmem:[%s6] sm:$0x1]
    %v721 = vlaneseq
    %v722 = vshrl.u32 %v721, 7
    %v723 = vsub.s32 0, %v722
    %v724 = vrot.slane %v719, %v723
    %v751 = vunpack.c.l.b16 %v694
    %v752 = vunpack.c.l.b16 %v695
    %v753 = vunpack.c.l.b16 %v696
    %v754 = vunpack.c.l.b16 %v697
    %v755 = vunpack.c.l.b16 %v698
    %v756 = vunpack.c.l.b16 %v699
    %v757 = vunpack.c.l.b16 %v700
    %v758 = vunpack.c.l.b16 %v701
    %v759 = vunpack.c.l.b16 %v702
    %v760 = vunpack.c.l.b16 %v703
    %v761 = vunpack.c.l.b16 %v704
    %v762 = vunpack.c.l.b16 %v705
    %v763 = vunpack.c.l.b16 %v706
    %v764 = vunpack.c.l.b16 %v707
    %v765 = vunpack.c.l.b16 %v708
    %v766 = vunpack.c.l.b16 %v709
    %v767 = vunpack.c.l.b16 %v710
    %v768 = vunpack.c.l.b16 %v711
    %v769 = vunpack.c.l.b16 %v712
    %v770 = vunpack.c.l.b16 %v713
    %v771 = vunpack.c.l.b16 %v714
    %v772 = vunpack.c.l.b16 %v715
    %v773 = vunpack.c.l.b16 %v716
    %v774 = vunpack.c.l.b16 %v717
    %v775 = vunpack.c.l.b16 %v718
    %v776 = vpack.c.b16 %v752, %v751
    %v777 = vpack.c.b16 %v754, %v753
    %v778 = vpack.c.b16 %v756, %v755
    %v779 = vpack.c.b16 %v758, %v757
    %v780 = vpack.c.b16 %v760, %v759
    %v781 = vpack.c.b16 %v762, %v761
    %v782 = vpack.c.b16 %v764, %v763
    %v783 = vpack.c.b16 %v766, %v765
    %v784 = vpack.c.b16 %v768, %v767
    %v785 = vpack.c.b16 %v770, %v769
    %v786 = vpack.c.b16 %v772, %v771
    %v787 = vpack.c.b16 %v774, %v773
    %v788 = vpack.c.b16 %v775, %v775
    %vm801 = vcmask 588800
    %v803 = vsel %vm801, %v693, 0
    %vm805 = vcmask 1043456
    %v807 = vsel %vm805, %v788, 0
    %809 = vmatprep.subr.bf16.mxu0 0
    %810 = vmatpush1.bf16.msra.mxu0 %v783
    %811 = vmatprep.subr.bf16.mxu0 0
    %812 = vmatpush1.bf16.msra.mxu0 %v782
    %813 = vmatprep.subr.bf16.mxu0 0
    %814 = vmatpush1.bf16.msra.mxu0 %v781
    %815 = vmatprep.subr.bf16.mxu0 0
    %816 = vmatpush1.bf16.msra.mxu0 %v780
    %817 = vmatprep.subr.bf16.mxu0 0
    %818 = vmatpush1.bf16.msra.mxu0 %v779
    %819 = vmatprep.subr.bf16.mxu0 0
    %820 = vmatpush1.bf16.msra.mxu0 %v778
    %821 = vmatprep.subr.bf16.mxu0 0
    %822 = vmatpush1.bf16.msra.mxu0 %v777
    %823 = vmatprep.subr.bf16.mxu0 0
    %824 = vmatpush1.bf16.msra.mxu0 %v776
    %825 = vmatprep.subr.bf16.mxu0 0
    %826 = vmatpush2.bf16.msra.mxu0 0
    %827 = vmatprep.subr.bf16.mxu0 0
    %828 = vmatpush2.bf16.msra.mxu0 0
    %829 = vmatprep.subr.bf16.mxu0 0
    %830 = vmatpush2.bf16.msra.mxu0 0
    %831 = vmatprep.subr.bf16.mxu0 0
    %832 = vmatpush2.bf16.msra.mxu0 %v807
    %833 = vmatprep.subr.bf16.mxu0 0
    %834 = vmatpush2.bf16.msra.mxu0 %v787
    %835 = vmatprep.subr.bf16.mxu0 0
    %836 = vmatpush2.bf16.msra.mxu0 %v786
    %837 = vmatprep.subr.bf16.mxu0 0
    %838 = vmatpush2.bf16.msra.mxu0 %v785
    %839 = vmatprep.subr.bf16.mxu0 0
    %840 = vmatpush2.bf16.msra.mxu0 %v784
    %841 = vmatprep.mubr.bf16.mxu0 %v803
    %842 = vmatmul.mubr.bf16.gmra.mxu0 %v692
    %v843 = vpop.f32.mrf.mxu0
    %v844 = vadd.f32 %v724, %v843
    %v845 = vpop.f32.mrf.mxu0
    %v846 = vpop.f32.mrf.mxu0
    %v847 = vadd.f32 %v724, %v846
    %v848 = vpop.f32.mrf.mxu0
    %849 = vdwg.mxu0
    %v850 = vmax.f32 %v844, 0.0
    %v851 = vmax.f32 %v847, 0.0
    %v852 = vpack.c.bf16 %v851, %v850
    %v853 = vld [vmem:[%s7] sm:$0xf]
    %v854 = vld [vmem:[%s7 + $0x4] sm:$0xf]
    %v855 = vld [vmem:[%s7 + $0x8] sm:$0xf]
    %v856 = vld [vmem:[%s7 + $0xc] sm:$0xf]
    %v857 = vld [vmem:[%s7 + $0x10] sm:$0xf]
    %v858 = vld [vmem:[%s7 + $0x14] sm:$0xf]
    %v859 = vld [vmem:[%s7 + $0x18] sm:$0x1]
    %v860 = vld [vmem:[%s8] sm:$0x1]
    %v862 = vlaneseq
    %v863 = vshrl.u32 %v862, 7
    %v864 = vsub.s32 0, %v863
    %v865 = vrot.slane %v860, %v864
    %v874 = vunpack.c.l.b16 %v853
    %v875 = vunpack.c.l.b16 %v854
    %v876 = vunpack.c.l.b16 %v855
    %v877 = vunpack.c.l.b16 %v856
    %v878 = vunpack.c.l.b16 %v857
    %v879 = vunpack.c.l.b16 %v858
    %v880 = vunpack.c.l.b16 %v859
    %v881 = vpack.c.b16 %v875, %v874
    %v882 = vpack.c.b16 %v877, %v876
    %v883 = vpack.c.b16 %v879, %v878
    %v884 = vpack.c.b16 %v880, %v880
    %vm888 = vcmask 408576
    %v890 = vsel %vm888, %v852, 0
    %v893 = vsel %vm173, %v884, 0
    %895 = vmatprep.subr.bf16.mxu0 0
    %896 = vmatpush1.bf16.msra.mxu0 0
    %897 = vmatprep.subr.bf16.mxu0 0
    %898 = vmatpush1.bf16.msra.mxu0 0
    %899 = vmatprep.subr.bf16.mxu0 0
    %900 = vmatpush1.bf16.msra.mxu0 0
    %901 = vmatprep.subr.bf16.mxu0 0
    %902 = vmatpush1.bf16.msra.mxu0 0
    %903 = vmatprep.subr.bf16.mxu0 0
    %904 = vmatpush1.bf16.msra.mxu0 %v893
    %905 = vmatprep.subr.bf16.mxu0 0
    %906 = vmatpush1.bf16.msra.mxu0 %v883
    %907 = vmatprep.subr.bf16.mxu0 0
    %908 = vmatpush1.bf16.msra.mxu0 %v882
    %909 = vmatprep.subr.bf16.mxu0 0
    %910 = vmatpush1.bf16.msra.mxu0 %v881
    %911 = vmatprep.subr.bf16.mxu0 0
    %912 = vmatpush2.bf16.msra.mxu0 0
    %913 = vmatprep.subr.bf16.mxu0 0
    %914 = vmatpush2.bf16.msra.mxu0 0
    %915 = vmatprep.subr.bf16.mxu0 0
    %916 = vmatpush2.bf16.msra.mxu0 0
    %917 = vmatprep.subr.bf16.mxu0 0
    %918 = vmatpush2.bf16.msra.mxu0 0
    %919 = vmatprep.subr.bf16.mxu0 0
    %920 = vmatpush2.bf16.msra.mxu0 0
    %921 = vmatprep.subr.bf16.mxu0 0
    %922 = vmatpush2.bf16.msra.mxu0 0
    %923 = vmatprep.subr.bf16.mxu0 0
    %924 = vmatpush2.bf16.msra.mxu0 0
    %925 = vmatprep.subr.bf16.mxu0 0
    %926 = vmatpush2.bf16.msra.mxu0 0
    %927 = vmatprep.mubr.bf16.mxu0 0
    %928 = vmatmul.mubr.bf16.gmra.mxu0 %v890
    %v929 = vpop.f32.mrf.mxu0
    %v930 = vadd.f32 %v865, %v929
    %v931 = vpop.f32.mrf.mxu0
    %v932 = vpop.f32.mrf.mxu0
    %v933 = vadd.f32 %v865, %v932
    %v934 = vpop.f32.mrf.mxu0
    %935 = vdwg.mxu0
    %v936 = vxor.u32 %v930, 2147483648
    %v937 = vxor.u32 %v933, 2147483648
    %v938 = vmul.f32 %v936, 1.442695
    %v939 = vpow.pop %v938
    %v940 = vmul.f32 %v937, 1.442695
    %v941 = vpow.pop %v940
    %v942 = vadd.f32 %v939, 1.0
    %v943 = vadd.f32 %v941, 1.0
    %v944 = vrcp.pop %v942
    %v945 = vmul.f32 1.0, %v944
    %v946 = vrcp.pop %v943
    %v947 = vmul.f32 1.0, %v946
    %948 = vst [vmem:[#allocation7] sm:$0xff] %v945
    %949 = vst [vmem:[#allocation7 + $0x8] sm:$0xff] %v947
    // Predicated region
    $region46: #{tpu_custom_call.1} parent=1 // pred_check
      _
    $region47: #{tpu_custom_call.1} parent=1 // pred_check_branch
      %951 = sbr.rel (0) target = $region49
    $region48: #{tpu_custom_call.1} parent=1 // pred_region
      %s953 = ssub.s32 256, 256
      %954 = vsyncadd [#allocation4], %s953
      %s955 = sshll.u32 [#allocation7], 4
      %s956 = int_to_ptr.vmem [resolvable:$true] %s955
      %961 = dma.vmem_to_hbm [thread:$0]  %s956, 256, %s9, [#allocation4], 128, 128, 8
    $region49: #{tpu_custom_call.1} parent=1 // pred_fallthru
      _
    // Predicated region
    $region50: #{tpu_custom_call.1} parent=1 // pred_check
      _
    $region51: #{tpu_custom_call.1} parent=1 // pred_check_branch
      %963 = sbr.rel (0) target = $region53
    $region52: #{tpu_custom_call.1} parent=1 // pred_region
      %964 = dma.done [#allocation4], 256
    $region53: #{tpu_custom_call.1} parent=1 // pred_fallthru
      _
    %965 = vsyncpa [#allocation3], 1
    %966 = vsyncpa [#allocation6], 1
    %967 = vsyncpa [#allocation4], 1

</llo_original>
